<compile_context>
chip_gen: v5e
topology: v5e:2x2
jax: 0.10.0
libtpu: 0.0.40
codegen_flags: <defaults>
</compile_context>

<pallas_src>
import jax
import jax.numpy as jnp
from jax.experimental import pallas as pl
from jax.experimental.pallas import tpu as pltpu


# ----------------------------------------------------------------------------
# Small helpers
# ----------------------------------------------------------------------------
def _round_up(v, m):
    return (v + m - 1) // m * m


def _ceil_div(a, b):
    return -(-a // b)


# ----------------------------------------------------------------------------
# Pallas kernel: fused 2-layer MLP head  (relu(x @ W6 + b6) @ W7 + b7, relu)
# K-tiled fc6 with f32 accumulator; epilogue (bias+relu+fc7+relu) at last k.
# ----------------------------------------------------------------------------
def _mlp_head_kernel(x_ref, w6_ref, b6_ref, w7_ref, b7_ref, o_ref, acc_ref):
    k = pl.program_id(1)

    @pl.when(k == 0)
    def _():
        acc_ref[...] = jnp.zeros_like(acc_ref)

    # bf16 MXU operands (x cast per-tile in VMEM -> no HBM cast pass), f32 acc.
    acc_ref[...] += jnp.dot(x_ref[...].astype(jnp.bfloat16), w6_ref[...],
                            preferred_element_type=jnp.float32)

    @pl.when(k == pl.num_programs(1) - 1)
    def _():
        h = jnp.maximum(acc_ref[...] + b6_ref[...], 0.0)
        h = jnp.dot(h.astype(w7_ref.dtype), w7_ref[...],
                    preferred_element_type=jnp.float32) + b7_ref[...]
        o_ref[...] = jnp.maximum(h, 0.0).astype(o_ref.dtype)


# ----------------------------------------------------------------------------
# Generation-aware tile selection
# ----------------------------------------------------------------------------
_GEN_CFG = {
    # gen: (max ROI-tile rows, VMEM budget for the kernel buffer set, TCs/chip)
    "v5e":     (128, 14 << 20, 1),   # fit v5e's small scoped default; v5e is compute-bound here
    "v6e":     (512, 100 << 20, 1),  # 128 MiB physical -> allow w6 to become resident
    "v7x":     (512, 44 << 20, 2),   # 64 MiB physical -> keep streamed K-tiling
    "unknown": (256, 28 << 20, 1),
}


def _tpu_generation():
    try:
        kind = jax.devices()[0].device_kind.lower()
    except Exception:
        return "unknown"
    if "v5 lite" in kind or "v5e" in kind or "v5lite" in kind:
        return "v5e"
    if "v6" in kind or "trillium" in kind:
        return "v6e"
    if "v7" in kind:
        return "v7x"
    return "unknown"


def _mlp_vmem_bytes(tile_r, tile_k, d_pad, rep, x_itemsize):
    kt = d_pad // tile_k
    b = tile_r * tile_k * x_itemsize * 2            # x tile, double-buffered
    if x_itemsize > 2:
        b += tile_r * tile_k * 2                    # in-kernel bf16 cast of the x tile
    b += tile_k * rep * 2 * (1 if kt == 1 else 2)   # w6 slab (bf16); resident => 1 buffer
    b += rep * rep * 2                              # w7 (bf16, single-buffered)
    b += 2 * rep * 4                                # biases
    b += tile_r * rep * 4 * 2                       # out tile (f32), double-buffered
    b += tile_r * rep * 4 * 2                       # acc scratch + epilogue temporaries
    return b


def _select_mlp_tiles(r_pad, d_pad, rep, x_itemsize):
    gen = _tpu_generation()
    max_tile_r, budget, n_cores = _GEN_CFG.get(gen, _GEN_CFG["unknown"])
    tile_r = min(max_tile_r, r_pad)
    # Guarantee >= 1 ROI tile per TensorCore (v7x has 2 TCs; "parallel" axis).
    if n_cores > 1 and r_pad > 16 and _ceil_div(r_pad, tile_r) < n_cores:
        tile_r = max(16, _round_up(_ceil_div(r_pad, n_cores), 16))

    # 128-multiple divisors of d_pad, largest first (128 always divides d_pad).
    divisors = [t for t in range(128, d_pad + 1, 128) if d_pad % t == 0]
    divisors.sort(reverse=True)

    while True:
        for tile_k in divisors:
            need = _mlp_vmem_bytes(tile_r, tile_k, d_pad, rep, x_itemsize)
            if need <= budget:
                return tile_r, tile_k, need + (12 << 20)   # +headroom for internal scratch
        if tile_r <= 16:
            break
        tile_r = max(16, _round_up(tile_r // 2, 16))
    tile_k = divisors[-1]
    return 16, tile_k, _mlp_vmem_bytes(16, tile_k, d_pad, rep, x_itemsize) + (12 << 20)


def mlp_head_pallas(x, w6, b6, w7, b7):
    """x: (R, D) f32/bf16; w6: (D, rep); b6/b7: (rep,); w7: (rep, rep).

    Weights are used as bf16 MXU operands with f32 accumulation (documented
    deviation from the fp32 nn.Linear reference; ~1e-2 relative tolerance).
    """
    R, D = x.shape
    rep = int(w6.shape[1])

    w6 = w6.astype(jnp.bfloat16)
    w7 = w7.astype(jnp.bfloat16)
    b6 = jnp.asarray(b6, jnp.float32).reshape(1, rep)
    b7 = jnp.asarray(b7, jnp.float32).reshape(1, rep)

    # ROI axis: caller pre-pads R to a multiple of 16 (dummy boxes); this is a
    # cheap fallback only.
    r_pad = _round_up(max(R, 1), 16)
    if r_pad != R:
        x = jnp.pad(x, ((0, r_pad - R), (0, 0)))

    # K axis: pad to a multiple of 128 (zero rows/cols are exact) so tile_k is
    # always a clean 128-multiple divisor of d_pad.
    d_pad = _round_up(D, 128)
    if d_pad != D:
        x = jnp.pad(x, ((0, 0), (0, d_pad - D)))
        w6 = jnp.pad(w6, ((0, d_pad - D), (0, 0)))

    tile_r, tile_k, vmem_limit = _select_mlp_tiles(r_pad, d_pad, rep, x.dtype.itemsize)
    kt = d_pad // tile_k
    grid = (pl.cdiv(r_pad, tile_r), kt)

    def build(single_buffer_hint):
        def spec(shape, index_map, invariant):
            if invariant and single_buffer_hint:
                return pl.BlockSpec(shape, index_map, pipeline_mode=pl.Buffered(1))
            return pl.BlockSpec(shape, index_map)

        return pl.pallas_call(
            _mlp_head_kernel,
            out_shape=jax.ShapeDtypeStruct((r_pad, rep), jnp.float32),
            grid=grid,
            in_specs=[
                spec((tile_r, tile_k), lambda i, k: (i, k), False),   # x tile
                spec((tile_k, rep),    lambda i, k: (k, 0), kt == 1), # w6 (resident iff kt==1)
                spec((1, rep),         lambda i, k: (0, 0), True),    # b6 (invariant)
                spec((rep, rep),       lambda i, k: (0, 0), True),    # w7 (invariant)
                spec((1, rep),         lambda i, k: (0, 0), True),    # b7 (invariant)
            ],
            out_specs=pl.BlockSpec((tile_r, rep), lambda i, k: (i, 0)),
            scratch_shapes=[pltpu.VMEM((tile_r, rep), jnp.float32)],
            compiler_params=pltpu.CompilerParams(
                dimension_semantics=("parallel", "arbitrary"),
                vmem_limit_bytes=int(vmem_limit)),
        )

    try:
        out = build(True)(x, w6, b6, w7, b7)
    except Exception:
        # TODO(synk): pl.Buffered(1) single-buffering rejected by this jax
        # version; fall back to default double-buffering of invariant operands.
        out = build(False)(x, w6, b6, w7, b7)
    return out[:R]


# ----------------------------------------------------------------------------
# Pooler (ROIAlign + FPN level assignment) — JAX glue, matmul-formulated.
# Each ROI is pooled against exactly one (its assigned) FPN level.
# TODO(synk): move ROIAlign into a scalar-prefetch Pallas kernel that DMAs only
#             a cropped ROI window (memory_space=pl.ANY + make_async_copy); the
#             dense per-ROI full-level-map contraction below is the dominant
#             cost at production feature-map sizes.
# ----------------------------------------------------------------------------
def _interp_matrix(start, bin_size, out_size, sampling_ratio, size, max_size):
    """(out_size, max_size) matrix folding bilinear interpolation + bin averaging
    along one spatial axis (Detectron ROIAlign, non-aligned).  `size` is the
    (possibly traced) valid extent of this level; `max_size` is the padded,
    static array extent."""
    g = sampling_ratio
    idx = jnp.arange(out_size * g, dtype=jnp.float32)
    bin_idx = jnp.floor(idx / g)
    sub_idx = idx - bin_idx * g
    coords = start + bin_idx * bin_size + (sub_idx + 0.5) * bin_size / g
    # Detectron: samples exactly at -1 or at size are valid (clamped), outside -> 0.
    valid = (coords >= -1.0) & (coords <= size)
    c = jnp.clip(coords, 0.0, size - 1.0)
    c0 = jnp.floor(c)
    c1 = jnp.minimum(c0 + 1.0, size - 1.0)
    lo = c - c0
    hi = 1.0 - lo
    grid = jnp.arange(max_size, dtype=jnp.float32)
    w = (hi[:, None] * (grid[None, :] == c0[:, None]).astype(jnp.float32)
         + lo[:, None] * (grid[None, :] == c1[:, None]).astype(jnp.float32))
    w = jnp.where(valid[:, None], w, 0.0)
    # average the g sub-samples of each output bin
    return w.reshape(out_size, g, max_size).mean(axis=1)


def pooler(feats, proposals, scales, out_size, sampling_ratio, *, pad_to=None):
    """feats: list of (N, C, Hl, Wl); proposals: list (per image) of (Ri, 4) xyxy boxes."""
    if sampling_ratio <= 0:
        # TODO(synk): adaptive sampling_ratio (=0 -> ceil(roi/out)) not reproduced.
        raise NotImplementedError("adaptive sampling_ratio==0 is not supported")

    rois = []
    for img_idx, boxes in enumerate(proposals):
        ids = jnp.full((boxes.shape[0], 1), float(img_idx), dtype=jnp.float32)
        rois.append(jnp.concatenate([ids, boxes.astype(jnp.float32)], axis=1))
    rois = jnp.concatenate(rois, axis=0)
    R = rois.shape[0]
    if pad_to is not None and pad_to > R:
        # Pad the ROI count with dummy boxes so downstream kernels never re-pad
        # the (R, D) activation in HBM.  Padded rows are sliced off by callers.
        rois = jnp.concatenate([rois, jnp.zeros((pad_to - R, 5), jnp.float32)], axis=0)

    # FPN LevelMapper (maskrcnn_benchmark semantics; area uses +1 "TO_REMOVE").
    k_min = -jnp.log2(jnp.float32(scales[0]))
    k_max = -jnp.log2(jnp.float32(scales[-1]))
    lvl0, s0, eps = 4.0, 224.0, 1e-6
    s = jnp.sqrt((rois[:, 3] - rois[:, 1] + 1.0) * (rois[:, 4] - rois[:, 2] + 1.0))
    target = jnp.floor(lvl0 + jnp.log2(s / s0 + eps))
    levels = (jnp.clip(target, k_min, k_max) - k_min).astype(jnp.int32)

    # Stack the levels (zero-padded to the largest spatial extent) so each ROI
    # gathers exactly one level map — removes the L-times redundant einsums.
    N, C = int(feats[0].shape[0]), int(feats[0].shape[1])
    Hmax = max(int(f.shape[2]) for f in feats)
    Wmax = max(int(f.shape[3]) for f in feats)
    stacked = jnp.stack([
        jnp.pad(f, ((0, 0), (0, 0), (0, Hmax - int(f.shape[2])), (0, Wmax - int(f.shape[3]))))
        for f in feats
    ])                                                    # (L, N, C, Hmax, Wmax)
    flat = stacked.reshape(len(feats) * N, C, Hmax, Wmax)
    sizes = jnp.asarray([[float(f.shape[2]), float(f.shape[3])] for f in feats], jnp.float32)
    scales_arr = jnp.asarray(scales, jnp.float32)

    def one(roi, lvl):
        b = roi[0].astype(jnp.int32)
        scale = scales_arr[lvl]
        h_sz = sizes[lvl, 0]
        w_sz = sizes[lvl, 1]
        start_w = roi[1] * scale
        start_h = roi[2] * scale
        roi_w = jnp.maximum(roi[3] * scale - start_w, 1.0)
        roi_h = jnp.maximum(roi[4] * scale - start_h, 1.0)
        my = _interp_matrix(start_h, roi_h / out_size, out_size, sampling_ratio, h_sz, Hmax)
        mx = _interp_matrix(start_w, roi_w / out_size, out_size, sampling_ratio, w_sz, Wmax)
        img = flat[lvl * N + b]                           # (C, Hmax, Wmax) — this ROI's level only
        tmp = jnp.einsum('ph,chw->cpw', my, img)
        return jnp.einsum('cpw,qw->cpq', tmp, mx)         # (C, out, out)

    return jax.vmap(one)(rois, levels)                    # (pad_to or R, C, out, out)


# ----------------------------------------------------------------------------
# FPN2MLPFeatureExtractor forward
# ----------------------------------------------------------------------------
def fpn2mlp_forward(feats, proposals, params, *, scales, resolution, sampling_ratio):
    R = int(sum(int(p.shape[0]) for p in proposals))
    C = int(feats[0].shape[1])
    rep = int(params["w7"].shape[0])
    if R == 0:
        return (jnp.zeros((0, rep), jnp.float32),
                jnp.zeros((0, C, resolution, resolution), jnp.float32))

    # Pad the ROI count upstream (multiple of 16 for bf16 sublane packing).
    r_pad = _round_up(R, 16)
    pooled = pooler(feats, proposals, scales, resolution, sampling_ratio, pad_to=r_pad)
    pre_fc_feats = pooled[:R]                              # == torch pooled x (f32)
    x = pooled.reshape(r_pad, -1)                          # == torch .view(N, -1) (free reshape)
    x = mlp_head_pallas(x, params["w6"], params["b6"], params["w7"], params["b7"])
    return x[:R], pre_fc_feats


def init_params(key, input_size, representation_size):
    k6, k7 = jax.random.split(key)
    # make_fc (no GN) == nn.Linear; stored transposed (in, out) for x @ W.
    w6 = jax.random.normal(k6, (input_size, representation_size), jnp.float32) * 0.02
    b6 = jnp.zeros((representation_size,), jnp.float32)
    w7 = jax.random.normal(k7, (representation_size, representation_size), jnp.float32) * 0.02
    b7 = jnp.zeros((representation_size,), jnp.float32)
    return {"w6": w6, "b6": b6, "w7": w7, "b7": b7}


if __name__ == "__main__":
    # Small synthetic config:
    #   BACKBONE.OUT_CHANNELS = 4, POOLER_RESOLUTION = 4,
    #   POOLER_SCALES = (1/4, 1/8), POOLER_SAMPLING_RATIO = 2, MLP_HEAD_DIM = 32
    C, resolution, sampling_ratio = 4, 4, 2
    scales = (0.25, 0.125)
    representation_size = 32
    input_size = C * resolution ** 2            # 64

    key = jax.random.PRNGKey(0)
    k_f0, k_f1, k_b0, k_b1, k_p = jax.random.split(key, 5)

    # Two FPN levels over a batch of 2 images (image size 64x64).
    feats = [
        jax.random.normal(k_f0, (2, C, 16, 16), jnp.float32),
        jax.random.normal(k_f1, (2, C, 8, 8), jnp.float32),
    ]

    def make_boxes(k, n):
        k1, k2 = jax.random.split(k)
        xy1 = jax.random.uniform(k1, (n, 2), minval=0.0, maxval=36.0)
        wh = jax.random.uniform(k2, (n, 2), minval=8.0, maxval=24.0)
        xy2 = jnp.clip(xy1 + wh, 0.0, 63.0)
        return jnp.concatenate([xy1, xy2], axis=1).astype(jnp.float32)   # (n, 4) xyxy

    proposals = [make_boxes(k_b0, 3), make_boxes(k_b1, 3)]               # 6 ROIs total

    params = init_params(k_p, input_size, representation_size)
    # Store weights bf16 once (standard inference practice; f32 MXU accumulation
    # in-kernel).  Biases stay f32.
    params = dict(params,
                  w6=params["w6"].astype(jnp.bfloat16),
                  w7=params["w7"].astype(jnp.bfloat16))

    x_out, pre_fc = fpn2mlp_forward(
        feats, proposals, params,
        scales=scales, resolution=resolution, sampling_ratio=sampling_ratio,
    )
    jax.block_until_ready(x_out)
    jax.block_until_ready(pre_fc)
    assert x_out.shape == (6, representation_size)
    assert pre_fc.shape == (6, C, resolution, resolution)
    assert bool(jnp.all(jnp.isfinite(x_out)))
    assert bool(jnp.all(jnp.isfinite(pre_fc)))
    print("KERNEL_OK")
</pallas_src>

<mosaic_0001>
module attributes {stable_mosaic.version = 11 : i64} {
  func.func @_mlp_head_kernel(%arg0: i32, %arg1: i32, %arg2: memref<16x128xf32, #tpu.memory_space<vmem>>, %arg3: memref<128x32xbf16, #tpu.memory_space<vmem>>, %arg4: memref<1x32xf32, #tpu.memory_space<vmem>>, %arg5: memref<32x32xbf16, #tpu.memory_space<vmem>>, %arg6: memref<1x32xf32, #tpu.memory_space<vmem>>, %arg7: memref<16x32xf32, #tpu.memory_space<vmem>>, %arg8: memref<16x32xf32, #tpu.memory_space<vmem>>) attributes {dimension_semantics = [#tpu.dimension_semantics<parallel>, #tpu.dimension_semantics<arbitrary>], iteration_bounds = array<i64: 1, 1>, scalar_prefetch = 0 : i64, scratch_operands = 1 : i64, tpu.core_type = #tpu.core_type<tc>, window_params = [{transform_indices = @transform_0, window_bounds = array<i64: 16, 128>}, {pipeline_mode = #tpu.pipeline_mode<synchronous>, transform_indices = @transform_1, window_bounds = array<i64: 128, 32>}, {pipeline_mode = #tpu.pipeline_mode<synchronous>, transform_indices = @transform_2, window_bounds = array<i64: 1, 32>}, {pipeline_mode = #tpu.pipeline_mode<synchronous>, transform_indices = @transform_3, window_bounds = array<i64: 32, 32>}, {pipeline_mode = #tpu.pipeline_mode<synchronous>, transform_indices = @transform_4, window_bounds = array<i64: 1, 32>}, {transform_indices = @transform_5, window_bounds = array<i64: 16, 32>}]} {
    %c0_i32 = arith.constant 0 : i32
    %0 = arith.cmpi eq, %arg1, %c0_i32 : i32
    %1 = arith.extui %0 : i1 to i32
    %c0_i32_0 = arith.constant 0 : i32
    %2 = arith.cmpi ne, %1, %c0_i32_0 : i32
    scf.if %2 {
      %cst_10 = arith.constant 0.000000e+00 : f32
      %13 = vector.broadcast %cst_10 : f32 to vector<16x32xf32>
      %c0_11 = arith.constant 0 : index
      %c0_12 = arith.constant 0 : index
      %14 = vector.load %arg8[%c0_11, %c0_12] : memref<16x32xf32, #tpu.memory_space<vmem>>, vector<16x32xf32>
      tpu.vector_store %arg8[%c0_11, %c0_12], %13 {strides = array<i32>} : memref<16x32xf32, #tpu.memory_space<vmem>>, vector<16x32xf32>,
    } else {
    }
    %c0 = arith.constant 0 : index
    %c0_1 = arith.constant 0 : index
    %3 = vector.load %arg8[%c0, %c0_1] : memref<16x32xf32, #tpu.memory_space<vmem>>, vector<16x32xf32>
    %c0_2 = arith.constant 0 : index
    %c0_3 = arith.constant 0 : index
    %4 = vector.load %arg2[%c0_2, %c0_3] : memref<16x128xf32, #tpu.memory_space<vmem>>, vector<16x128xf32>
    %5 = arith.truncf %4 : vector<16x128xf32> to vector<16x128xbf16>
    %c0_4 = arith.constant 0 : index
    %c0_5 = arith.constant 0 : index
    %6 = vector.load %arg3[%c0_4, %c0_5] : memref<128x32xbf16, #tpu.memory_space<vmem>>, vector<128x32xbf16>
    %cst = arith.constant dense<0.000000e+00> : vector<16x32xf32>
    %7 = tpu.matmul %5, %6, %cst {dimension_numbers = #tpu.dot_dimension_numbers<[1], [0], [0], [1], [0, 0, 1, 1], [], []>} : vector<16x128xbf16>, vector<128x32xbf16>, vector<16x32xf32> -> vector<16x32xf32>
    %8 = arith.addf %3, %7 : vector<16x32xf32>
    %c0_6 = arith.constant 0 : index
    %c0_7 = arith.constant 0 : index
    %9 = vector.load %arg8[%c0_6, %c0_7] : memref<16x32xf32, #tpu.memory_space<vmem>>, vector<16x32xf32>
    tpu.vector_store %arg8[%c0_6, %c0_7], %8 {strides = array<i32>} : memref<16x32xf32, #tpu.memory_space<vmem>>, vector<16x32xf32>,
    %c0_i32_8 = arith.constant 0 : i32
    %10 = arith.cmpi eq, %arg1, %c0_i32_8 : i32
    %11 = arith.extui %10 : i1 to i32
    %c0_i32_9 = arith.constant 0 : i32
    %12 = arith.cmpi ne, %11, %c0_i32_9 : i32
    scf.if %12 {
      %c0_10 = arith.constant 0 : index
      %c0_11 = arith.constant 0 : index
      %13 = vector.load %arg8[%c0_10, %c0_11] : memref<16x32xf32, #tpu.memory_space<vmem>>, vector<16x32xf32>
      %c0_12 = arith.constant 0 : index
      %c0_13 = arith.constant 0 : index
      %14 = vector.load %arg4[%c0_12, %c0_13] : memref<1x32xf32, #tpu.memory_space<vmem>>, vector<1x32xf32>
      %15 = vector.broadcast %14 : vector<1x32xf32> to vector<16x32xf32>
      %16 = arith.addf %13, %15 : vector<16x32xf32>
      %cst_14 = arith.constant 0.000000e+00 : f32
      %17 = vector.broadcast %cst_14 : f32 to vector<16x32xf32>
      %18 = arith.maximumf %16, %17 : vector<16x32xf32>
      %19 = arith.truncf %18 : vector<16x32xf32> to vector<16x32xbf16>
      %c0_15 = arith.constant 0 : index
      %c0_16 = arith.constant 0 : index
      %20 = vector.load %arg5[%c0_15, %c0_16] : memref<32x32xbf16, #tpu.memory_space<vmem>>, vector<32x32xbf16>
      %cst_17 = arith.constant dense<0.000000e+00> : vector<16x32xf32>
      %21 = tpu.matmul %19, %20, %cst_17 {dimension_numbers = #tpu.dot_dimension_numbers<[1], [0], [0], [1], [0, 0, 1, 1], [], []>} : vector<16x32xbf16>, vector<32x32xbf16>, vector<16x32xf32> -> vector<16x32xf32>
      %c0_18 = arith.constant 0 : index
      %c0_19 = arith.constant 0 : index
      %22 = vector.load %arg6[%c0_18, %c0_19] : memref<1x32xf32, #tpu.memory_space<vmem>>, vector<1x32xf32>
      %23 = vector.broadcast %22 : vector<1x32xf32> to vector<16x32xf32>
      %24 = arith.addf %21, %23 : vector<16x32xf32>
      %cst_20 = arith.constant 0.000000e+00 : f32
      %25 = vector.broadcast %cst_20 : f32 to vector<16x32xf32>
      %26 = arith.maximumf %24, %25 : vector<16x32xf32>
      %c0_21 = arith.constant 0 : index
      %c0_22 = arith.constant 0 : index
      %27 = vector.load %arg7[%c0_21, %c0_22] : memref<16x32xf32, #tpu.memory_space<vmem>>, vector<16x32xf32>
      tpu.vector_store %arg7[%c0_21, %c0_22], %26 {strides = array<i32>} : memref<16x32xf32, #tpu.memory_space<vmem>>, vector<16x32xf32>,
    } else {
    }
    return
  }
  func.func @transform_0(%arg0: i32, %arg1: i32) -> (i32, i32) {
    %c0_i32 = arith.constant 0 : i32
    return %arg0, %arg1 : i32, i32
  }
  func.func @transform_1(%arg0: i32, %arg1: i32) -> (i32, i32) {
    %c0_i32 = arith.constant 0 : i32
    %c0_i32_0 = arith.constant 0 : i32
    return %arg1, %c0_i32 : i32, i32
  }
  func.func @transform_2(%arg0: i32, %arg1: i32) -> (i32, i32) {
    %c0_i32 = arith.constant 0 : i32
    %c0_i32_0 = arith.constant 0 : i32
    %c0_i32_1 = arith.constant 0 : i32
    return %c0_i32, %c0_i32_0 : i32, i32
  }
  func.func @transform_3(%arg0: i32, %arg1: i32) -> (i32, i32) {
    %c0_i32 = arith.constant 0 : i32
    %c0_i32_0 = arith.constant 0 : i32
    %c0_i32_1 = arith.constant 0 : i32
    return %c0_i32, %c0_i32_0 : i32, i32
  }
  func.func @transform_4(%arg0: i32, %arg1: i32) -> (i32, i32) {
    %c0_i32 = arith.constant 0 : i32
    %c0_i32_0 = arith.constant 0 : i32
    %c0_i32_1 = arith.constant 0 : i32
    return %c0_i32, %c0_i32_0 : i32, i32
  }
  func.func @transform_5(%arg0: i32, %arg1: i32) -> (i32, i32) {
    %c0_i32 = arith.constant 0 : i32
    %c0_i32_0 = arith.constant 0 : i32
    return %arg0, %c0_i32 : i32, i32
  }
}

module attributes {stable_mosaic.version = 11 : i64} {
  func.func @_mlp_head_kernel(%arg0: i32, %arg1: i32, %arg2: memref<16x128xf32, #tpu.memory_space<vmem>>, %arg3: memref<128x32xbf16, #tpu.memory_space<vmem>>, %arg4: memref<1x32xf32, #tpu.memory_space<vmem>>, %arg5: memref<32x32xbf16, #tpu.memory_space<vmem>>, %arg6: memref<1x32xf32, #tpu.memory_space<vmem>>, %arg7: memref<16x32xf32, #tpu.memory_space<vmem>>, %arg8: memref<16x32xf32, #tpu.memory_space<vmem>>) attributes {dimension_semantics = [#tpu.dimension_semantics<parallel>, #tpu.dimension_semantics<arbitrary>], iteration_bounds = array<i64: 1, 1>, scalar_prefetch = 0 : i64, scratch_operands = 1 : i64, tpu.core_type = #tpu.core_type<tc>, window_params = [{transform_indices = @transform_0, window_bounds = array<i64: 16, 128>}, {transform_indices = @transform_1, window_bounds = array<i64: 128, 32>}, {pipeline_mode = #tpu.pipeline_mode<synchronous>, transform_indices = @transform_2, window_bounds = array<i64: 1, 32>}, {pipeline_mode = #tpu.pipeline_mode<synchronous>, transform_indices = @transform_3, window_bounds = array<i64: 32, 32>}, {pipeline_mode = #tpu.pipeline_mode<synchronous>, transform_indices = @transform_4, window_bounds = array<i64: 1, 32>}, {transform_indices = @transform_5, window_bounds = array<i64: 16, 32>}]} {
    %c0_i32 = arith.constant 0 : i32
    %0 = arith.cmpi eq, %arg1, %c0_i32 : i32
    %1 = arith.extui %0 : i1 to i32
    %c0_i32_0 = arith.constant 0 : i32
    %2 = arith.cmpi ne, %1, %c0_i32_0 : i32
    scf.if %2 {
      %cst_10 = arith.constant 0.000000e+00 : f32
      %13 = vector.broadcast %cst_10 : f32 to vector<16x32xf32>
      %c0_11 = arith.constant 0 : index
      %c0_12 = arith.constant 0 : index
      %14 = vector.load %arg8[%c0_11, %c0_12] : memref<16x32xf32, #tpu.memory_space<vmem>>, vector<16x32xf32>
      tpu.vector_store %arg8[%c0_11, %c0_12], %13 {strides = array<i32>} : memref<16x32xf32, #tpu.memory_space<vmem>>, vector<16x32xf32>,
    } else {
    }
    %c0 = arith.constant 0 : index
    %c0_1 = arith.constant 0 : index
    %3 = vector.load %arg8[%c0, %c0_1] : memref<16x32xf32, #tpu.memory_space<vmem>>, vector<16x32xf32>
    %c0_2 = arith.constant 0 : index
    %c0_3 = arith.constant 0 : index
    %4 = vector.load %arg2[%c0_2, %c0_3] : memref<16x128xf32, #tpu.memory_space<vmem>>, vector<16x128xf32>
    %5 = arith.truncf %4 : vector<16x128xf32> to vector<16x128xbf16>
    %c0_4 = arith.constant 0 : index
    %c0_5 = arith.constant 0 : index
    %6 = vector.load %arg3[%c0_4, %c0_5] : memref<128x32xbf16, #tpu.memory_space<vmem>>, vector<128x32xbf16>
    %cst = arith.constant dense<0.000000e+00> : vector<16x32xf32>
    %7 = tpu.matmul %5, %6, %cst {dimension_numbers = #tpu.dot_dimension_numbers<[1], [0], [0], [1], [0, 0, 1, 1], [], []>} : vector<16x128xbf16>, vector<128x32xbf16>, vector<16x32xf32> -> vector<16x32xf32>
    %8 = arith.addf %3, %7 : vector<16x32xf32>
    %c0_6 = arith.constant 0 : index
    %c0_7 = arith.constant 0 : index
    %9 = vector.load %arg8[%c0_6, %c0_7] : memref<16x32xf32, #tpu.memory_space<vmem>>, vector<16x32xf32>
    tpu.vector_store %arg8[%c0_6, %c0_7], %8 {strides = array<i32>} : memref<16x32xf32, #tpu.memory_space<vmem>>, vector<16x32xf32>,
    %c0_i32_8 = arith.constant 0 : i32
    %10 = arith.cmpi eq, %arg1, %c0_i32_8 : i32
    %11 = arith.extui %10 : i1 to i32
    %c0_i32_9 = arith.constant 0 : i32
    %12 = arith.cmpi ne, %11, %c0_i32_9 : i32
    scf.if %12 {
      %c0_10 = arith.constant 0 : index
      %c0_11 = arith.constant 0 : index
      %13 = vector.load %arg8[%c0_10, %c0_11] : memref<16x32xf32, #tpu.memory_space<vmem>>, vector<16x32xf32>
      %c0_12 = arith.constant 0 : index
      %c0_13 = arith.constant 0 : index
      %14 = vector.load %arg4[%c0_12, %c0_13] : memref<1x32xf32, #tpu.memory_space<vmem>>, vector<1x32xf32>
      %15 = vector.broadcast %14 : vector<1x32xf32> to vector<16x32xf32>
      %16 = arith.addf %13, %15 : vector<16x32xf32>
      %cst_14 = arith.constant 0.000000e+00 : f32
      %17 = vector.broadcast %cst_14 : f32 to vector<16x32xf32>
      %18 = arith.maximumf %16, %17 : vector<16x32xf32>
      %19 = arith.truncf %18 : vector<16x32xf32> to vector<16x32xbf16>
      %c0_15 = arith.constant 0 : index
      %c0_16 = arith.constant 0 : index
      %20 = vector.load %arg5[%c0_15, %c0_16] : memref<32x32xbf16, #tpu.memory_space<vmem>>, vector<32x32xbf16>
      %cst_17 = arith.constant dense<0.000000e+00> : vector<16x32xf32>
      %21 = tpu.matmul %19, %20, %cst_17 {dimension_numbers = #tpu.dot_dimension_numbers<[1], [0], [0], [1], [0, 0, 1, 1], [], []>} : vector<16x32xbf16>, vector<32x32xbf16>, vector<16x32xf32> -> vector<16x32xf32>
      %c0_18 = arith.constant 0 : index
      %c0_19 = arith.constant 0 : index
      %22 = vector.load %arg6[%c0_18, %c0_19] : memref<1x32xf32, #tpu.memory_space<vmem>>, vector<1x32xf32>
      %23 = vector.broadcast %22 : vector<1x32xf32> to vector<16x32xf32>
      %24 = arith.addf %21, %23 : vector<16x32xf32>
      %cst_20 = arith.constant 0.000000e+00 : f32
      %25 = vector.broadcast %cst_20 : f32 to vector<16x32xf32>
      %26 = arith.maximumf %24, %25 : vector<16x32xf32>
      %c0_21 = arith.constant 0 : index
      %c0_22 = arith.constant 0 : index
      %27 = vector.load %arg7[%c0_21, %c0_22] : memref<16x32xf32, #tpu.memory_space<vmem>>, vector<16x32xf32>
      tpu.vector_store %arg7[%c0_21, %c0_22], %26 {strides = array<i32>} : memref<16x32xf32, #tpu.memory_space<vmem>>, vector<16x32xf32>,
    } else {
    }
    return
  }
  func.func @transform_0(%arg0: i32, %arg1: i32) -> (i32, i32) {
    %c0_i32 = arith.constant 0 : i32
    return %arg0, %arg1 : i32, i32
  }
  func.func @transform_1(%arg0: i32, %arg1: i32) -> (i32, i32) {
    %c0_i32 = arith.constant 0 : i32
    %c0_i32_0 = arith.constant 0 : i32
    return %arg1, %c0_i32 : i32, i32
  }
  func.func @transform_2(%arg0: i32, %arg1: i32) -> (i32, i32) {
    %c0_i32 = arith.constant 0 : i32
    %c0_i32_0 = arith.constant 0 : i32
    %c0_i32_1 = arith.constant 0 : i32
    return %c0_i32, %c0_i32_0 : i32, i32
  }
  func.func @transform_3(%arg0: i32, %arg1: i32) -> (i32, i32) {
    %c0_i32 = arith.constant 0 : i32
    %c0_i32_0 = arith.constant 0 : i32
    %c0_i32_1 = arith.constant 0 : i32
    return %c0_i32, %c0_i32_0 : i32, i32
  }
  func.func @transform_4(%arg0: i32, %arg1: i32) -> (i32, i32) {
    %c0_i32 = arith.constant 0 : i32
    %c0_i32_0 = arith.constant 0 : i32
    %c0_i32_1 = arith.constant 0 : i32
    return %c0_i32, %c0_i32_0 : i32, i32
  }
  func.func @transform_5(%arg0: i32, %arg1: i32) -> (i32, i32) {
    %c0_i32 = arith.constant 0 : i32
    %c0_i32_0 = arith.constant 0 : i32
    return %arg0, %c0_i32 : i32, i32
  }
}

</mosaic_0001>

<llo_original>
// kernel: tpu_custom_call.1
$region0: #{tpu_custom_call.1}
  #allocation0 [shape = 'u32[]', space=smem, size = 0x4, offset = 0x4, fixed_abs, tag = 'smem constant byte address 0x4 - core index']
  #allocation1 [shape = 'u32[72,128]{1,0:T(1,128)}', space=vmem, size = 0x9000, scoped, tag = 'internal scratch']
  #allocation2 [shape = 'f32[16,32]{1,0:T(8,128)}', space=vmem, size = 0x2000, scoped, tag = 'scratch operand']
  %s0 = inlined_call_operand.vmem [shape: f32[16,128], index: 0, kind: input, shape index: {}]
  %s1 = inlined_call_operand.vmem [shape: bf16[128,32], index: 1, kind: input, shape index: {}]
  %s2 = inlined_call_operand.vmem [shape: f32[1,32], index: 2, kind: input, shape index: {}]
  %s3 = inlined_call_operand.vmem [shape: bf16[32,32], index: 3, kind: input, shape index: {}]
  %s4 = inlined_call_operand.vmem [shape: f32[1,32], index: 4, kind: input, shape index: {}]
  %s5 = inlined_call_operand.hbm [shape: f32[16,32], index: 5, kind: output, shape index: {}]
  %s6 = sld [smem:[#allocation0]]
  $region38: #{tpu_custom_call.1} parent=0
    _
  %s8 = ssub.s32 1, %s6
  %s9 = scalar_select 0, %s8, %s6
  $region1: #{tpu_custom_call.1} parent=0
    #allocation3 [shape = 'u8[8192]{0}', space=vmem, size = 0x2000, scoped, tag = 'output window, operand 0, single buffered']
    #allocation4 [shape = 's32[1]{0}', space=sflag, size = 0x4, scoped, tag = 'scoped memory for tpu_custom_call.1']
    %10 = vsyncpa [#allocation4], 0
    // Predicated region
    $region2: #{tpu_custom_call.1} parent=1 // pred_check
      _
    $region3: #{tpu_custom_call.1} parent=1 // pred_check_branch
      %12 = sbr.rel (0) target = $region5
    $region4: #{tpu_custom_call.1} parent=1 // pred_region
      _
    $region5: #{tpu_custom_call.1} parent=1 // pred_fallthru
      _
    // Predicated region
    $region6: #{tpu_custom_call.1} parent=1 // pred_check
      _
    $region7: #{tpu_custom_call.1} parent=1 // pred_check_branch
      %14 = sbr.rel (0) target = $region9
    $region8: #{tpu_custom_call.1} parent=1 // pred_region
      _
    $region9: #{tpu_custom_call.1} parent=1 // pred_fallthru
      _
    // Predicated region
    $region10: #{tpu_custom_call.1} parent=1 // pred_check
      _
    $region11: #{tpu_custom_call.1} parent=1 // pred_check_branch
      %16 = sbr.rel (0) target = $region13
    $region12: #{tpu_custom_call.1} parent=1 // pred_region
      _
    $region13: #{tpu_custom_call.1} parent=1 // pred_fallthru
      _
    // Predicated region
    $region14: #{tpu_custom_call.1} parent=1 // pred_check
      _
    $region15: #{tpu_custom_call.1} parent=1 // pred_check_branch
      %18 = sbr.rel (0) target = $region17
    $region16: #{tpu_custom_call.1} parent=1 // pred_region
      _
    $region17: #{tpu_custom_call.1} parent=1 // pred_fallthru
      _
    // Predicated region
    $region18: #{tpu_custom_call.1} parent=1 // pred_check
      _
    $region19: #{tpu_custom_call.1} parent=1 // pred_check_branch
      %20 = sbr.rel (0) target = $region21
    $region20: #{tpu_custom_call.1} parent=1 // pred_region
      _
    $region21: #{tpu_custom_call.1} parent=1 // pred_fallthru
      _
    %p22 = scmp.eq.s32.totalorder 0, 0
    // Predicated region
    $region22: #{tpu_custom_call.1} parent=1 // pred_check
      %p23 = pneg %p22
    $region23: #{tpu_custom_call.1} parent=1 // pred_check_branch
      %25 = sbr.rel (%p23) target = $region25
    $region24: #{tpu_custom_call.1} parent=1 // pred_region
      %vm26 = vcmask 261120
      %27 = vst.msk [vmem:[#allocation2] sm:$0xff] %vm26, 0.0
      %28 = vst.msk [vmem:[#allocation2 + $0x8] sm:$0xff] %vm26, 0.0
    $region25: #{tpu_custom_call.1} parent=1 // pred_fallthru
      _
    %v29 = vld [vmem:[#allocation2] sm:$0xff]
    %v30 = vld [vmem:[#allocation2 + $0x8] sm:$0xff]
    %v31 = vld [vmem:[%s0] sm:$0xff]
    %v32 = vld [vmem:[%s0 + $0x8] sm:$0xff]
    %v33 = vpack.c.bf16 %v32, %v31
    %v34 = vld [vmem:[%s1] sm:$0xf]
    %v35 = vld [vmem:[%s1 + $0x4] sm:$0xf]
    %v36 = vld [vmem:[%s1 + $0x8] sm:$0xf]
    %v37 = vld [vmem:[%s1 + $0xc] sm:$0xf]
    %v38 = vld [vmem:[%s1 + $0x10] sm:$0xf]
    %v39 = vld [vmem:[%s1 + $0x14] sm:$0xf]
    %v40 = vld [vmem:[%s1 + $0x18] sm:$0xf]
    %v41 = vld [vmem:[%s1 + $0x1c] sm:$0xf]
    %v42 = vld [vmem:[%s1 + $0x20] sm:$0xf]
    %v43 = vld [vmem:[%s1 + $0x24] sm:$0xf]
    %v44 = vld [vmem:[%s1 + $0x28] sm:$0xf]
    %v45 = vld [vmem:[%s1 + $0x2c] sm:$0xf]
    %v46 = vld [vmem:[%s1 + $0x30] sm:$0xf]
    %v47 = vld [vmem:[%s1 + $0x34] sm:$0xf]
    %v48 = vld [vmem:[%s1 + $0x38] sm:$0xf]
    %v49 = vld [vmem:[%s1 + $0x3c] sm:$0xf]
    %v66 = vunpack.c.l.b16 %v34
    %v67 = vunpack.c.l.b16 %v35
    %v68 = vunpack.c.l.b16 %v36
    %v69 = vunpack.c.l.b16 %v37
    %v70 = vunpack.c.l.b16 %v38
    %v71 = vunpack.c.l.b16 %v39
    %v72 = vunpack.c.l.b16 %v40
    %v73 = vunpack.c.l.b16 %v41
    %v74 = vunpack.c.l.b16 %v42
    %v75 = vunpack.c.l.b16 %v43
    %v76 = vunpack.c.l.b16 %v44
    %v77 = vunpack.c.l.b16 %v45
    %v78 = vunpack.c.l.b16 %v46
    %v79 = vunpack.c.l.b16 %v47
    %v80 = vunpack.c.l.b16 %v48
    %v81 = vunpack.c.l.b16 %v49
    %v82 = vpack.c.b16 %v67, %v66
    %v83 = vpack.c.b16 %v69, %v68
    %v84 = vpack.c.b16 %v71, %v70
    %v85 = vpack.c.b16 %v73, %v72
    %v86 = vpack.c.b16 %v75, %v74
    %v87 = vpack.c.b16 %v77, %v76
    %v88 = vpack.c.b16 %v79, %v78
    %v89 = vpack.c.b16 %v81, %v80
    %98 = vmatpush.bf16.msra.mxu0 %v89
    %99 = vmatpush.bf16.msra.mxu0 %v88
    %100 = vmatpush.bf16.msra.mxu0 %v87
    %101 = vmatpush.bf16.msra.mxu0 %v86
    %102 = vmatpush.bf16.msra.mxu0 %v85
    %103 = vmatpush.bf16.msra.mxu0 %v84
    %104 = vmatpush.bf16.msra.mxu0 %v83
    %105 = vmatpush.bf16.msra.mxu0 %v82
    %106 = vmatmul.bf16.gmra.mxu0 %v33
    %v107 = vpop.f32.mrf.mxu0
    %v108 = vadd.f32 0.0, %v107
    %v109 = vpop.f32.mrf.mxu0
    %v110 = vadd.f32 0.0, %v109
    %111 = vdwg.mxu0
    %v112 = vadd.f32 %v29, %v108
    %v113 = vadd.f32 %v30, %v110
    %vm114 = vcmask 261120
    %115 = vst.msk [vmem:[#allocation2] sm:$0xff] %vm114, %v112
    %116 = vst.msk [vmem:[#allocation2 + $0x8] sm:$0xff] %vm114, %v113
    // Predicated region
    $region26: #{tpu_custom_call.1} parent=1 // pred_check
      %p117 = pneg %p22
    $region27: #{tpu_custom_call.1} parent=1 // pred_check_branch
      %119 = sbr.rel (%p117) target = $region29
    $region28: #{tpu_custom_call.1} parent=1 // pred_region
      %v120 = vld [vmem:[#allocation2] sm:$0xff]
      %v121 = vld [vmem:[#allocation2 + $0x8] sm:$0xff]
      %v122 = vld [vmem:[%s2] sm:$0x1]
      %v124 = vperm.slane %v122, 0
      %v126 = vadd.f32 %v120, %v124
      %v127 = vadd.f32 %v121, %v124
      %v128 = vmax.f32 %v126, 0.0
      %v129 = vmax.f32 %v127, 0.0
      %v130 = vpack.c.bf16 %v129, %v128
      %v131 = vld [vmem:[%s3] sm:$0xf]
      %v132 = vld [vmem:[%s3 + $0x4] sm:$0xf]
      %v133 = vld [vmem:[%s3 + $0x8] sm:$0xf]
      %v134 = vld [vmem:[%s3 + $0xc] sm:$0xf]
      %v135 = vld [vmem:[%s4] sm:$0x1]
      %v137 = vperm.slane %v135, 0
      %v143 = vunpack.c.l.b16 %v131
      %v144 = vunpack.c.l.b16 %v132
      %v145 = vunpack.c.l.b16 %v133
      %v146 = vunpack.c.l.b16 %v134
      %v147 = vpack.c.b16 %v144, %v143
      %v148 = vpack.c.b16 %v146, %v145
      %v152 = vsel %vm114, %v130, 0
      %154 = vmatpush.bf16.msra.mxu0 0
      %155 = vmatpush.bf16.msra.mxu0 0
      %156 = vmatpush.bf16.msra.mxu0 0
      %157 = vmatpush.bf16.msra.mxu0 0
      %158 = vmatpush.bf16.msra.mxu0 0
      %159 = vmatpush.bf16.msra.mxu0 0
      %160 = vmatpush.bf16.msra.mxu0 %v148
      %161 = vmatpush.bf16.msra.mxu0 %v147
      %162 = vmatmul.bf16.gmra.mxu0 %v152
      %v163 = vpop.f32.mrf.mxu0
      %v164 = vadd.f32 %v137, %v163
      %v165 = vpop.f32.mrf.mxu0
      %v166 = vadd.f32 %v137, %v165
      %167 = vdwg.mxu0
      %v168 = vmax.f32 %v164, 0.0
      %v169 = vmax.f32 %v166, 0.0
      %170 = vst.msk [vmem:[#allocation3] sm:$0xff] %vm114, %v168
      %171 = vst.msk [vmem:[#allocation3 + $0x8] sm:$0xff] %vm114, %v169
    $region29: #{tpu_custom_call.1} parent=1 // pred_fallthru
      _
    // Predicated region
    $region30: #{tpu_custom_call.1} parent=1 // pred_check
      _
    $region31: #{tpu_custom_call.1} parent=1 // pred_check_branch
      %173 = sbr.rel (0) target = $region33
    $region32: #{tpu_custom_call.1} parent=1 // pred_region
      %175 = vsyncadd [#allocation4], 0
      %s176 = sshll.u32 [#allocation3], 4
      %s177 = int_to_ptr.vmem [resolvable:$true] %s176
      %s178 = sshll.u32 %s5, 4
      %s179 = int_to_ptr.hbm [resolvable:$true] %s178
      %184 = dma.vmem_to_hbm [thread:$0]  %s177, 256, %s179, [#allocation4], 128, 128, 8
    $region33: #{tpu_custom_call.1} parent=1 // pred_fallthru
      _
    // Predicated region
    $region34: #{tpu_custom_call.1} parent=1 // pred_check
      _
    $region35: #{tpu_custom_call.1} parent=1 // pred_check_branch
      %186 = sbr.rel (0) target = $region37
    $region36: #{tpu_custom_call.1} parent=1 // pred_region
      %188 = dma.done [#allocation4], 256
    $region37: #{tpu_custom_call.1} parent=1 // pred_fallthru
      _
    %189 = vsyncpa [#allocation4], 1

// kernel: tpu_custom_call.1
$region0: #{tpu_custom_call.1}
  #allocation0 [shape = 'u32[]', space=smem, size = 0x4, offset = 0x4, fixed_abs, tag = 'smem constant byte address 0x4 - core index']
  #allocation1 [shape = 'u32[72,128]{1,0:T(1,128)}', space=vmem, size = 0x9000, scoped, tag = 'internal scratch']
  #allocation2 [shape = 'f32[16,32]{1,0:T(8,128)}', space=vmem, size = 0x2000, scoped, tag = 'scratch operand']
  %s0 = inlined_call_operand.vmem [shape: f32[16,128], index: 0, kind: input, shape index: {}]
  %s1 = inlined_call_operand.vmem [shape: bf16[128,32], index: 1, kind: input, shape index: {}]
  %s2 = inlined_call_operand.vmem [shape: f32[1,32], index: 2, kind: input, shape index: {}]
  %s3 = inlined_call_operand.vmem [shape: bf16[32,32], index: 3, kind: input, shape index: {}]
  %s4 = inlined_call_operand.vmem [shape: f32[1,32], index: 4, kind: input, shape index: {}]
  %s5 = inlined_call_operand.hbm [shape: f32[16,32], index: 5, kind: output, shape index: {}]
  %s6 = sld [smem:[#allocation0]]
  $region38: #{tpu_custom_call.1} parent=0
    _
  %s8 = ssub.s32 1, %s6
  %s9 = scalar_select 0, %s8, %s6
  $region1: #{tpu_custom_call.1} parent=0
    #allocation3 [shape = 'u8[8192]{0}', space=vmem, size = 0x2000, scoped, tag = 'output window, operand 0, single buffered']
    #allocation4 [shape = 's32[1]{0}', space=sflag, size = 0x4, scoped, tag = 'scoped memory for tpu_custom_call.1']
    %10 = vsyncpa [#allocation4], 0
    // Predicated region
    $region2: #{tpu_custom_call.1} parent=1 // pred_check
      _
    $region3: #{tpu_custom_call.1} parent=1 // pred_check_branch
      %12 = sbr.rel (0) target = $region5
    $region4: #{tpu_custom_call.1} parent=1 // pred_region
      _
    $region5: #{tpu_custom_call.1} parent=1 // pred_fallthru
      _
    // Predicated region
    $region6: #{tpu_custom_call.1} parent=1 // pred_check
      _
    $region7: #{tpu_custom_call.1} parent=1 // pred_check_branch
      %14 = sbr.rel (0) target = $region9
    $region8: #{tpu_custom_call.1} parent=1 // pred_region
      _
    $region9: #{tpu_custom_call.1} parent=1 // pred_fallthru
      _
    // Predicated region
    $region10: #{tpu_custom_call.1} parent=1 // pred_check
      _
    $region11: #{tpu_custom_call.1} parent=1 // pred_check_branch
      %16 = sbr.rel (0) target = $region13
    $region12: #{tpu_custom_call.1} parent=1 // pred_region
      _
    $region13: #{tpu_custom_call.1} parent=1 // pred_fallthru
      _
    // Predicated region
    $region14: #{tpu_custom_call.1} parent=1 // pred_check
      _
    $region15: #{tpu_custom_call.1} parent=1 // pred_check_branch
      %18 = sbr.rel (0) target = $region17
    $region16: #{tpu_custom_call.1} parent=1 // pred_region
      _
    $region17: #{tpu_custom_call.1} parent=1 // pred_fallthru
      _
    // Predicated region
    $region18: #{tpu_custom_call.1} parent=1 // pred_check
      _
    $region19: #{tpu_custom_call.1} parent=1 // pred_check_branch
      %20 = sbr.rel (0) target = $region21
    $region20: #{tpu_custom_call.1} parent=1 // pred_region
      _
    $region21: #{tpu_custom_call.1} parent=1 // pred_fallthru
      _
    %p22 = scmp.eq.s32.totalorder 0, 0
    // Predicated region
    $region22: #{tpu_custom_call.1} parent=1 // pred_check
      %p23 = pneg %p22
    $region23: #{tpu_custom_call.1} parent=1 // pred_check_branch
      %25 = sbr.rel (%p23) target = $region25
    $region24: #{tpu_custom_call.1} parent=1 // pred_region
      %vm26 = vcmask 261120
      %27 = vst.msk [vmem:[#allocation2] sm:$0xff] %vm26, 0.0
      %28 = vst.msk [vmem:[#allocation2 + $0x8] sm:$0xff] %vm26, 0.0
    $region25: #{tpu_custom_call.1} parent=1 // pred_fallthru
      _
    %v29 = vld [vmem:[#allocation2] sm:$0xff]
    %v30 = vld [vmem:[#allocation2 + $0x8] sm:$0xff]
    %v31 = vld [vmem:[%s0] sm:$0xff]
    %v32 = vld [vmem:[%s0 + $0x8] sm:$0xff]
    %v33 = vpack.c.bf16 %v32, %v31
    %v34 = vld [vmem:[%s1] sm:$0xf]
    %v35 = vld [vmem:[%s1 + $0x4] sm:$0xf]
    %v36 = vld [vmem:[%s1 + $0x8] sm:$0xf]
    %v37 = vld [vmem:[%s1 + $0xc] sm:$0xf]
    %v38 = vld [vmem:[%s1 + $0x10] sm:$0xf]
    %v39 = vld [vmem:[%s1 + $0x14] sm:$0xf]
    %v40 = vld [vmem:[%s1 + $0x18] sm:$0xf]
    %v41 = vld [vmem:[%s1 + $0x1c] sm:$0xf]
    %v42 = vld [vmem:[%s1 + $0x20] sm:$0xf]
    %v43 = vld [vmem:[%s1 + $0x24] sm:$0xf]
    %v44 = vld [vmem:[%s1 + $0x28] sm:$0xf]
    %v45 = vld [vmem:[%s1 + $0x2c] sm:$0xf]
    %v46 = vld [vmem:[%s1 + $0x30] sm:$0xf]
    %v47 = vld [vmem:[%s1 + $0x34] sm:$0xf]
    %v48 = vld [vmem:[%s1 + $0x38] sm:$0xf]
    %v49 = vld [vmem:[%s1 + $0x3c] sm:$0xf]
    %v66 = vunpack.c.l.b16 %v34
    %v67 = vunpack.c.l.b16 %v35
    %v68 = vunpack.c.l.b16 %v36
    %v69 = vunpack.c.l.b16 %v37
    %v70 = vunpack.c.l.b16 %v38
    %v71 = vunpack.c.l.b16 %v39
    %v72 = vunpack.c.l.b16 %v40
    %v73 = vunpack.c.l.b16 %v41
    %v74 = vunpack.c.l.b16 %v42
    %v75 = vunpack.c.l.b16 %v43
    %v76 = vunpack.c.l.b16 %v44
    %v77 = vunpack.c.l.b16 %v45
    %v78 = vunpack.c.l.b16 %v46
    %v79 = vunpack.c.l.b16 %v47
    %v80 = vunpack.c.l.b16 %v48
    %v81 = vunpack.c.l.b16 %v49
    %v82 = vpack.c.b16 %v67, %v66
    %v83 = vpack.c.b16 %v69, %v68
    %v84 = vpack.c.b16 %v71, %v70
    %v85 = vpack.c.b16 %v73, %v72
    %v86 = vpack.c.b16 %v75, %v74
    %v87 = vpack.c.b16 %v77, %v76
    %v88 = vpack.c.b16 %v79, %v78
    %v89 = vpack.c.b16 %v81, %v80
    %98 = vmatpush.bf16.msra.mxu0 %v89
    %99 = vmatpush.bf16.msra.mxu0 %v88
    %100 = vmatpush.bf16.msra.mxu0 %v87
    %101 = vmatpush.bf16.msra.mxu0 %v86
    %102 = vmatpush.bf16.msra.mxu0 %v85
    %103 = vmatpush.bf16.msra.mxu0 %v84
    %104 = vmatpush.bf16.msra.mxu0 %v83
    %105 = vmatpush.bf16.msra.mxu0 %v82
    %106 = vmatmul.bf16.gmra.mxu0 %v33
    %v107 = vpop.f32.mrf.mxu0
    %v108 = vadd.f32 0.0, %v107
    %v109 = vpop.f32.mrf.mxu0
    %v110 = vadd.f32 0.0, %v109
    %111 = vdwg.mxu0
    %v112 = vadd.f32 %v29, %v108
    %v113 = vadd.f32 %v30, %v110
    %vm114 = vcmask 261120
    %115 = vst.msk [vmem:[#allocation2] sm:$0xff] %vm114, %v112
    %116 = vst.msk [vmem:[#allocation2 + $0x8] sm:$0xff] %vm114, %v113
    // Predicated region
    $region26: #{tpu_custom_call.1} parent=1 // pred_check
      %p117 = pneg %p22
    $region27: #{tpu_custom_call.1} parent=1 // pred_check_branch
      %119 = sbr.rel (%p117) target = $region29
    $region28: #{tpu_custom_call.1} parent=1 // pred_region
      %v120 = vld [vmem:[#allocation2] sm:$0xff]
      %v121 = vld [vmem:[#allocation2 + $0x8] sm:$0xff]
      %v122 = vld [vmem:[%s2] sm:$0x1]
      %v124 = vperm.slane %v122, 0
      %v126 = vadd.f32 %v120, %v124
      %v127 = vadd.f32 %v121, %v124
      %v128 = vmax.f32 %v126, 0.0
      %v129 = vmax.f32 %v127, 0.0
      %v130 = vpack.c.bf16 %v129, %v128
      %v131 = vld [vmem:[%s3] sm:$0xf]
      %v132 = vld [vmem:[%s3 + $0x4] sm:$0xf]
      %v133 = vld [vmem:[%s3 + $0x8] sm:$0xf]
      %v134 = vld [vmem:[%s3 + $0xc] sm:$0xf]
      %v135 = vld [vmem:[%s4] sm:$0x1]
      %v137 = vperm.slane %v135, 0
      %v143 = vunpack.c.l.b16 %v131
      %v144 = vunpack.c.l.b16 %v132
      %v145 = vunpack.c.l.b16 %v133
      %v146 = vunpack.c.l.b16 %v134
      %v147 = vpack.c.b16 %v144, %v143
      %v148 = vpack.c.b16 %v146, %v145
      %v152 = vsel %vm114, %v130, 0
      %154 = vmatpush.bf16.msra.mxu0 0
      %155 = vmatpush.bf16.msra.mxu0 0
      %156 = vmatpush.bf16.msra.mxu0 0
      %157 = vmatpush.bf16.msra.mxu0 0
      %158 = vmatpush.bf16.msra.mxu0 0
      %159 = vmatpush.bf16.msra.mxu0 0
      %160 = vmatpush.bf16.msra.mxu0 %v148
      %161 = vmatpush.bf16.msra.mxu0 %v147
      %162 = vmatmul.bf16.gmra.mxu0 %v152
      %v163 = vpop.f32.mrf.mxu0
      %v164 = vadd.f32 %v137, %v163
      %v165 = vpop.f32.mrf.mxu0
      %v166 = vadd.f32 %v137, %v165
      %167 = vdwg.mxu0
      %v168 = vmax.f32 %v164, 0.0
      %v169 = vmax.f32 %v166, 0.0
      %170 = vst.msk [vmem:[#allocation3] sm:$0xff] %vm114, %v168
      %171 = vst.msk [vmem:[#allocation3 + $0x8] sm:$0xff] %vm114, %v169
    $region29: #{tpu_custom_call.1} parent=1 // pred_fallthru
      _
    // Predicated region
    $region30: #{tpu_custom_call.1} parent=1 // pred_check
      _
    $region31: #{tpu_custom_call.1} parent=1 // pred_check_branch
      %173 = sbr.rel (0) target = $region33
    $region32: #{tpu_custom_call.1} parent=1 // pred_region
      %175 = vsyncadd [#allocation4], 0
      %s176 = sshll.u32 [#allocation3], 4
      %s177 = int_to_ptr.vmem [resolvable:$true] %s176
      %s178 = sshll.u32 %s5, 4
      %s179 = int_to_ptr.hbm [resolvable:$true] %s178
      %184 = dma.vmem_to_hbm [thread:$0]  %s177, 256, %s179, [#allocation4], 128, 128, 8
    $region33: #{tpu_custom_call.1} parent=1 // pred_fallthru
      _
    // Predicated region
    $region34: #{tpu_custom_call.1} parent=1 // pred_check
      _
    $region35: #{tpu_custom_call.1} parent=1 // pred_check_branch
      %186 = sbr.rel (0) target = $region37
    $region36: #{tpu_custom_call.1} parent=1 // pred_region
      %188 = dma.done [#allocation4], 256
    $region37: #{tpu_custom_call.1} parent=1 // pred_fallthru
      _
    %189 = vsyncpa [#allocation4], 1

</llo_original>
